<compile_context>
chip_gen: v5e
topology: v5e:2x2
jax: 0.10.0
libtpu: 0.0.40
codegen_flags: <defaults>
</compile_context>

<pallas_src>
import functools

import numpy as np
import jax
import jax.numpy as jnp
from jax.experimental import pallas as pl
from jax.experimental.pallas import tpu as pltpu


def _round_up(x, m):
    return ((x + m - 1) // m) * m


# ----------------------------------------------------------------------------
# Filter construction (plain JAX, matches the torch windowed_sinc_delay_filters
# with blur_std=0, finite_support=True, flip_negative_delays=True).
# ----------------------------------------------------------------------------
def _windowed_sinc(T, simulator_offset):
    return 0.5 * (1.0 + jnp.cos(2.0 * jnp.pi * T / (2.0 * simulator_offset))) * jnp.sinc(T)


def windowed_sinc_delay_filters(old_toa, delta, fs, delay_max, simulator_offset):
    B, M, K = old_toa.shape
    N = B * M * K
    D = int(delay_max * fs) + 2 * simulator_offset
    fd = (delta * fs).reshape(N)                                        # fractional delays
    T = (jnp.arange(-simulator_offset, int(delay_max * fs) + simulator_offset,
                    dtype=jnp.float32)[None, :]
         - jnp.abs(fd)[:, None])                                        # (N, D)
    new_toa = delta + old_toa
    new_toa = jnp.where(new_toa == 0, 1.0, new_toa)
    scale = (old_toa / new_toa).reshape(N)[:, None]
    win = scale * _windowed_sinc(T, simulator_offset)
    # finite support: keep only +/- simulator_offset samples around the peak
    idx = jnp.arange(D)[None, :]
    am = jnp.argmax(win, axis=-1)[:, None]
    mask_zero = (idx < am - simulator_offset) | (idx > am + simulator_offset)
    win = jnp.where(mask_zero, 0.0, win)
    # flip rows corresponding to negative delays
    win = jnp.where((fd < 0)[:, None], win[:, ::-1], win)
    return win, fd


# ----------------------------------------------------------------------------
# Pallas kernel: per-row full convolution + sign-dependent window extraction.
# ----------------------------------------------------------------------------
def _conv_select_kernel(h_ref, phi_ref, ispos_ref, out_ref, hpad_ref, *, so, D, P, lpad):
    """For each row n and output sample t (t < P_out):
         positive fd : out[t] = sum_s phi[s] * H[t + so       - s]
         negative fd : out[t] = sum_s phi[s] * H[t + D-1 - so - s]
       (H treated as zero outside [0, P) -> zero-padded VMEM scratch)."""
    TN, P_out = out_ref.shape
    W = P_out + D - 1                    # width of the sign-selected window
    W_scr = hpad_ref.shape[1]            # lpad + P_out + D - 1

    # Refresh the zero borders every step (cheap; keeps every core's private
    # scratch valid under "parallel" grid sharding), then drop the H block in
    # the middle.  lpad is a multiple of 128 -> lane-aligned store.
    hpad_ref[:, 0:lpad] = jnp.zeros((TN, lpad), jnp.float32)
    hpad_ref[:, lpad + P:W_scr] = jnp.zeros((TN, W_scr - lpad - P), jnp.float32)
    hpad_ref[:, lpad:lpad + P] = h_ref[...]

    # Sign-dependent window, hoisted OUT of the tap loop (single select).
    pos = hpad_ref[:, lpad - (D - 1) + so: lpad - (D - 1) + so + W]
    neg = hpad_ref[:, lpad - so: lpad - so + W]
    hsel = jnp.where(ispos_ref[...] > 0.0, pos, neg)          # (TN, W)

    # Single D-tap shift/MAC loop on the VPU.  D is small and static here;
    # for large D (e.g. simulator_offset=40) switch to lax.fori_loop over a
    # scratch-resident hsel with pl.ds tap slices to bound live ranges.
    acc = phi_ref[:, 0:1] * hsel[:, D - 1:D - 1 + P_out]
    for s in range(1, D):
        acc = acc + phi_ref[:, s:s + 1] * hsel[:, D - 1 - s:D - 1 - s + P_out]
    out_ref[...] = acc


# ----------------------------------------------------------------------------
# Wrapper = ModuleCorrection.forward (blur_std=0).  Returns H_estimate (B,M,K,P).
# ----------------------------------------------------------------------------
@functools.partial(jax.jit,
                   static_argnames=("simulator_offset", "fs", "delay_max", "row_tile"))
def module_correction_forward(delta_estimate, H_noise, measured_toa, *,
                              simulator_offset, fs, delay_max, row_tile=None):
    B, M, K, P = H_noise.shape
    N = B * M * K
    so = int(simulator_offset)
    D = int(delay_max * fs) + 2 * so

    old_toa = measured_toa.reshape(B, M, K).astype(jnp.float32)
    delta = delta_estimate.reshape(B, M, K).astype(jnp.float32)
    H = H_noise.reshape(N, P).astype(jnp.float32)

    phi, fd = windowed_sinc_delay_filters(old_toa, delta, fs, delay_max, so)
    ispos = (fd >= 0).astype(jnp.float32)[:, None]                  # (N, 1)

    # Lane-dense output: compute/store P_out = round_up(P, 128) columns.
    P_out = _round_up(P, 128)

    # Row tile: ~1 MiB output block by default, multiple of 8 sublanes.
    if row_tile is None:
        row_tile = max(8, min(1024, ((1 << 20) // (4 * P_out)) // 8 * 8))
    TN = min(_round_up(row_tile, 8), _round_up(N, 8))
    N_pad = _round_up(N, TN)
    if N_pad != N:
        H = jnp.pad(H, ((0, N_pad - N), (0, 0)))
        phi = jnp.pad(phi, ((0, N_pad - N), (0, 0)))
        ispos = jnp.pad(ispos, ((0, N_pad - N), (0, 0)), constant_values=1.0)

    # Padded-H scratch: [ lpad zeros | H (P cols) | zeros ] with lpad % 128 == 0.
    lpad = _round_up(D - 1, 128)
    w_scr = lpad + P_out + D - 1

    kernel = functools.partial(_conv_select_kernel, so=so, D=D, P=P, lpad=lpad)
    grid = (N_pad // TN,)
    cost = pl.CostEstimate(
        flops=2 * N_pad * P_out * D,
        transcendentals=0,
        bytes_accessed=4 * N_pad * (P + D + 1 + P_out),
    )

    out = pl.pallas_call(
        kernel,
        out_shape=jax.ShapeDtypeStruct((N_pad, P_out), jnp.float32),
        grid=grid,
        in_specs=[
            pl.BlockSpec((TN, P), lambda i: (i, 0)),      # H rows (no time-axis pad in HBM)
            pl.BlockSpec((TN, D), lambda i: (i, 0)),      # fractional-delay filters
            pl.BlockSpec((TN, 1), lambda i: (i, 0)),      # sign flags
        ],
        out_specs=pl.BlockSpec((TN, P_out), lambda i: (i, 0)),
        scratch_shapes=[pltpu.VMEM((TN, w_scr), jnp.float32)],
        compiler_params=pltpu.CompilerParams(dimension_semantics=("parallel",)),
        cost_estimate=cost,
    )(H, phi, ispos)

    if N_pad != N or P_out != P:
        out = out[:N, :P]
    return out.reshape(B, M, K, P)


# ----------------------------------------------------------------------------
# Independent numpy reference (port of the torch forward path).
# ----------------------------------------------------------------------------
def reference_numpy(delta, H, old_toa, so, fs, delay_max):
    B, M, K, P = H.shape
    N = B * M * K
    D = int(delay_max * fs) + 2 * so
    Hf = np.asarray(H, np.float64).reshape(N, P)
    delta = np.asarray(delta, np.float64).reshape(B, M, K)
    old_toa = np.asarray(old_toa, np.float64).reshape(B, M, K)
    fd = (delta * fs).reshape(N)
    T = np.arange(-so, int(delay_max * fs) + so, dtype=np.float64)[None, :] - np.abs(fd)[:, None]
    new_toa = delta + old_toa
    new_toa[new_toa == 0] = 1.0
    ws = 0.5 * (1 + np.cos(2 * np.pi * T / (2 * so))) * np.sinc(T)
    win = (old_toa / new_toa).reshape(N)[:, None] * ws
    idx = np.arange(D)[None, :]
    am = np.argmax(win, axis=-1)[:, None]
    win[(idx < am - so) | (idx > am + so)] = 0.0
    win[fd < 0, :] = win[fd < 0, ::-1]
    out = np.zeros((N, P))
    for n in range(N):
        full = np.convolve(Hf[n], win[n], mode="full")           # length P + D - 1
        if fd[n] >= 0:
            out[n] = full[so:so + P]
        else:
            out[n] = full[D - 1 - so:D - 1 - so + P]
    return out.reshape(B, M, K, P)


if __name__ == "__main__":
    def run_case(B, M, K, P, so, fs, delay_max, row_tile, key):
        k1, k2, k3 = jax.random.split(key, 3)
        H_noise = jax.random.normal(k1, (B, M, K, P), dtype=jnp.float32)
        measured_toa = jax.random.uniform(k2, (B, M, K), minval=0.5, maxval=2.0,
                                          dtype=jnp.float32)
        delta_estimate = jax.random.uniform(k3, (B, M, K), minval=-0.2, maxval=0.2,
                                            dtype=jnp.float32)
        H_estimate = module_correction_forward(
            delta_estimate, H_noise, measured_toa,
            simulator_offset=so, fs=fs, delay_max=delay_max, row_tile=row_tile)
        H_estimate = jax.block_until_ready(H_estimate)
        assert H_estimate.shape == (B, M, K, P)
        ref = reference_numpy(np.asarray(delta_estimate), np.asarray(H_noise),
                              np.asarray(measured_toa), so, fs, delay_max)
        np.testing.assert_allclose(np.asarray(H_estimate), ref, rtol=2e-4, atol=2e-4)

    key = jax.random.PRNGKey(0)
    k1, k2 = jax.random.split(key)
    # Case 1: P=64 (< 128 -> lane-padded output path), N=24 not a multiple of the
    # row tile (row padding + 2 grid steps).  Filter length D = 16.
    run_case(2, 3, 4, 64, 4, 16, 0.5, 16, k1)
    # Case 2: lane-dense P=128, auto row tile (single grid step), N=64.
    run_case(2, 4, 8, 128, 4, 16, 0.5, None, k2)
    print("KERNEL_OK")
</pallas_src>

<mosaic_0001>
module attributes {stable_mosaic.version = 11 : i64} {
  func.func @_conv_select_kernel(%arg0: i32, %arg1: memref<16x64xf32, #tpu.memory_space<vmem>>, %arg2: memref<16x16xf32, #tpu.memory_space<vmem>>, %arg3: memref<16x1xf32, #tpu.memory_space<vmem>>, %arg4: memref<16x128xf32, #tpu.memory_space<vmem>>, %arg5: memref<16x271xf32, #tpu.memory_space<vmem>>) attributes {dimension_semantics = [#tpu.dimension_semantics<parallel>], iteration_bounds = array<i64: 2>, scalar_prefetch = 0 : i64, scratch_operands = 1 : i64, tpu.core_type = #tpu.core_type<tc>, window_params = [{transform_indices = @transform_0, window_bounds = array<i64: 16, 64>}, {transform_indices = @transform_1, window_bounds = array<i64: 16, 16>}, {transform_indices = @transform_2, window_bounds = array<i64: 16, 1>}, {transform_indices = @transform_3, window_bounds = array<i64: 16, 128>}]} {
    %cst = arith.constant 0.000000e+00 : f32
    %0 = vector.broadcast %cst : f32 to vector<16x128xf32>
    %c0 = arith.constant 0 : index
    %c0_0 = arith.constant 0 : index
    %1 = vector.load %arg5[%c0, %c0_0] : memref<16x271xf32, #tpu.memory_space<vmem>>, vector<16x128xf32>
    tpu.vector_store %arg5[%c0, %c0_0], %0 {strides = array<i32>} : memref<16x271xf32, #tpu.memory_space<vmem>>, vector<16x128xf32>,
    %cst_1 = arith.constant 0.000000e+00 : f32
    %2 = vector.broadcast %cst_1 : f32 to vector<16x79xf32>
    %c0_2 = arith.constant 0 : index
    %c192 = arith.constant 192 : index
    %3 = vector.load %arg5[%c0_2, %c192] : memref<16x271xf32, #tpu.memory_space<vmem>>, vector<16x79xf32>
    tpu.vector_store %arg5[%c0_2, %c192], %2 {strides = array<i32>} : memref<16x271xf32, #tpu.memory_space<vmem>>, vector<16x79xf32>,
    %c0_3 = arith.constant 0 : index
    %c0_4 = arith.constant 0 : index
    %4 = vector.load %arg1[%c0_3, %c0_4] : memref<16x64xf32, #tpu.memory_space<vmem>>, vector<16x64xf32>
    %c0_5 = arith.constant 0 : index
    %c128 = arith.constant 128 : index
    %5 = vector.load %arg5[%c0_5, %c128] : memref<16x271xf32, #tpu.memory_space<vmem>>, vector<16x64xf32>
    tpu.vector_store %arg5[%c0_5, %c128], %4 {strides = array<i32>} : memref<16x271xf32, #tpu.memory_space<vmem>>, vector<16x64xf32>,
    %c0_6 = arith.constant 0 : index
    %c117 = arith.constant 117 : index
    %6 = vector.load %arg5[%c0_6, %c117] : memref<16x271xf32, #tpu.memory_space<vmem>>, vector<16x143xf32>
    %c0_7 = arith.constant 0 : index
    %c124 = arith.constant 124 : index
    %7 = vector.load %arg5[%c0_7, %c124] : memref<16x271xf32, #tpu.memory_space<vmem>>, vector<16x143xf32>
    %c0_8 = arith.constant 0 : index
    %c0_9 = arith.constant 0 : index
    %8 = vector.load %arg3[%c0_8, %c0_9] : memref<16x1xf32, #tpu.memory_space<vmem>>, vector<16x1xf32>
    %cst_10 = arith.constant 0.000000e+00 : f32
    %9 = vector.broadcast %cst_10 : f32 to vector<16x1xf32>
    %10 = arith.cmpf ogt, %8, %9 : vector<16x1xf32>
    %11 = vector.shape_cast %10 : vector<16x1xi1> to vector<16x1xi1>
    %12 = vector.broadcast %11 : vector<16x1xi1> to vector<16x143xi1>
    %13 = arith.select %12, %6, %7 : vector<16x143xi1>, vector<16x143xf32>
    %c0_11 = arith.constant 0 : index
    %c0_12 = arith.constant 0 : index
    %14 = vector.load %arg2[%c0_11, %c0_12] : memref<16x16xf32, #tpu.memory_space<vmem>>, vector<16x1xf32>
    %15 = vector.extract_strided_slice %13 {offsets = [0, 15], sizes = [16, 128], strides = [1, 1]} : vector<16x143xf32> to vector<16x128xf32>
    %16 = vector.broadcast %14 : vector<16x1xf32> to vector<16x128xf32>
    %17 = arith.mulf %16, %15 : vector<16x128xf32>
    %c0_13 = arith.constant 0 : index
    %c1 = arith.constant 1 : index
    %18 = vector.load %arg2[%c0_13, %c1] : memref<16x16xf32, #tpu.memory_space<vmem>>, vector<16x1xf32>
    %19 = vector.extract_strided_slice %13 {offsets = [0, 14], sizes = [16, 128], strides = [1, 1]} : vector<16x143xf32> to vector<16x128xf32>
    %20 = vector.broadcast %18 : vector<16x1xf32> to vector<16x128xf32>
    %21 = arith.mulf %20, %19 : vector<16x128xf32>
    %22 = arith.addf %17, %21 : vector<16x128xf32>
    %c0_14 = arith.constant 0 : index
    %c2 = arith.constant 2 : index
    %23 = vector.load %arg2[%c0_14, %c2] : memref<16x16xf32, #tpu.memory_space<vmem>>, vector<16x1xf32>
    %24 = vector.extract_strided_slice %13 {offsets = [0, 13], sizes = [16, 128], strides = [1, 1]} : vector<16x143xf32> to vector<16x128xf32>
    %25 = vector.broadcast %23 : vector<16x1xf32> to vector<16x128xf32>
    %26 = arith.mulf %25, %24 : vector<16x128xf32>
    %27 = arith.addf %22, %26 : vector<16x128xf32>
    %c0_15 = arith.constant 0 : index
    %c3 = arith.constant 3 : index
    %28 = vector.load %arg2[%c0_15, %c3] : memref<16x16xf32, #tpu.memory_space<vmem>>, vector<16x1xf32>
    %29 = vector.extract_strided_slice %13 {offsets = [0, 12], sizes = [16, 128], strides = [1, 1]} : vector<16x143xf32> to vector<16x128xf32>
    %30 = vector.broadcast %28 : vector<16x1xf32> to vector<16x128xf32>
    %31 = arith.mulf %30, %29 : vector<16x128xf32>
    %32 = arith.addf %27, %31 : vector<16x128xf32>
    %c0_16 = arith.constant 0 : index
    %c4 = arith.constant 4 : index
    %33 = vector.load %arg2[%c0_16, %c4] : memref<16x16xf32, #tpu.memory_space<vmem>>, vector<16x1xf32>
    %34 = vector.extract_strided_slice %13 {offsets = [0, 11], sizes = [16, 128], strides = [1, 1]} : vector<16x143xf32> to vector<16x128xf32>
    %35 = vector.broadcast %33 : vector<16x1xf32> to vector<16x128xf32>
    %36 = arith.mulf %35, %34 : vector<16x128xf32>
    %37 = arith.addf %32, %36 : vector<16x128xf32>
    %c0_17 = arith.constant 0 : index
    %c5 = arith.constant 5 : index
    %38 = vector.load %arg2[%c0_17, %c5] : memref<16x16xf32, #tpu.memory_space<vmem>>, vector<16x1xf32>
    %39 = vector.extract_strided_slice %13 {offsets = [0, 10], sizes = [16, 128], strides = [1, 1]} : vector<16x143xf32> to vector<16x128xf32>
    %40 = vector.broadcast %38 : vector<16x1xf32> to vector<16x128xf32>
    %41 = arith.mulf %40, %39 : vector<16x128xf32>
    %42 = arith.addf %37, %41 : vector<16x128xf32>
    %c0_18 = arith.constant 0 : index
    %c6 = arith.constant 6 : index
    %43 = vector.load %arg2[%c0_18, %c6] : memref<16x16xf32, #tpu.memory_space<vmem>>, vector<16x1xf32>
    %44 = vector.extract_strided_slice %13 {offsets = [0, 9], sizes = [16, 128], strides = [1, 1]} : vector<16x143xf32> to vector<16x128xf32>
    %45 = vector.broadcast %43 : vector<16x1xf32> to vector<16x128xf32>
    %46 = arith.mulf %45, %44 : vector<16x128xf32>
    %47 = arith.addf %42, %46 : vector<16x128xf32>
    %c0_19 = arith.constant 0 : index
    %c7 = arith.constant 7 : index
    %48 = vector.load %arg2[%c0_19, %c7] : memref<16x16xf32, #tpu.memory_space<vmem>>, vector<16x1xf32>
    %49 = vector.extract_strided_slice %13 {offsets = [0, 8], sizes = [16, 128], strides = [1, 1]} : vector<16x143xf32> to vector<16x128xf32>
    %50 = vector.broadcast %48 : vector<16x1xf32> to vector<16x128xf32>
    %51 = arith.mulf %50, %49 : vector<16x128xf32>
    %52 = arith.addf %47, %51 : vector<16x128xf32>
    %c0_20 = arith.constant 0 : index
    %c8 = arith.constant 8 : index
    %53 = vector.load %arg2[%c0_20, %c8] : memref<16x16xf32, #tpu.memory_space<vmem>>, vector<16x1xf32>
    %54 = vector.extract_strided_slice %13 {offsets = [0, 7], sizes = [16, 128], strides = [1, 1]} : vector<16x143xf32> to vector<16x128xf32>
    %55 = vector.broadcast %53 : vector<16x1xf32> to vector<16x128xf32>
    %56 = arith.mulf %55, %54 : vector<16x128xf32>
    %57 = arith.addf %52, %56 : vector<16x128xf32>
    %c0_21 = arith.constant 0 : index
    %c9 = arith.constant 9 : index
    %58 = vector.load %arg2[%c0_21, %c9] : memref<16x16xf32, #tpu.memory_space<vmem>>, vector<16x1xf32>
    %59 = vector.extract_strided_slice %13 {offsets = [0, 6], sizes = [16, 128], strides = [1, 1]} : vector<16x143xf32> to vector<16x128xf32>
    %60 = vector.broadcast %58 : vector<16x1xf32> to vector<16x128xf32>
    %61 = arith.mulf %60, %59 : vector<16x128xf32>
    %62 = arith.addf %57, %61 : vector<16x128xf32>
    %c0_22 = arith.constant 0 : index
    %c10 = arith.constant 10 : index
    %63 = vector.load %arg2[%c0_22, %c10] : memref<16x16xf32, #tpu.memory_space<vmem>>, vector<16x1xf32>
    %64 = vector.extract_strided_slice %13 {offsets = [0, 5], sizes = [16, 128], strides = [1, 1]} : vector<16x143xf32> to vector<16x128xf32>
    %65 = vector.broadcast %63 : vector<16x1xf32> to vector<16x128xf32>
    %66 = arith.mulf %65, %64 : vector<16x128xf32>
    %67 = arith.addf %62, %66 : vector<16x128xf32>
    %c0_23 = arith.constant 0 : index
    %c11 = arith.constant 11 : index
    %68 = vector.load %arg2[%c0_23, %c11] : memref<16x16xf32, #tpu.memory_space<vmem>>, vector<16x1xf32>
    %69 = vector.extract_strided_slice %13 {offsets = [0, 4], sizes = [16, 128], strides = [1, 1]} : vector<16x143xf32> to vector<16x128xf32>
    %70 = vector.broadcast %68 : vector<16x1xf32> to vector<16x128xf32>
    %71 = arith.mulf %70, %69 : vector<16x128xf32>
    %72 = arith.addf %67, %71 : vector<16x128xf32>
    %c0_24 = arith.constant 0 : index
    %c12 = arith.constant 12 : index
    %73 = vector.load %arg2[%c0_24, %c12] : memref<16x16xf32, #tpu.memory_space<vmem>>, vector<16x1xf32>
    %74 = vector.extract_strided_slice %13 {offsets = [0, 3], sizes = [16, 128], strides = [1, 1]} : vector<16x143xf32> to vector<16x128xf32>
    %75 = vector.broadcast %73 : vector<16x1xf32> to vector<16x128xf32>
    %76 = arith.mulf %75, %74 : vector<16x128xf32>
    %77 = arith.addf %72, %76 : vector<16x128xf32>
    %c0_25 = arith.constant 0 : index
    %c13 = arith.constant 13 : index
    %78 = vector.load %arg2[%c0_25, %c13] : memref<16x16xf32, #tpu.memory_space<vmem>>, vector<16x1xf32>
    %79 = vector.extract_strided_slice %13 {offsets = [0, 2], sizes = [16, 128], strides = [1, 1]} : vector<16x143xf32> to vector<16x128xf32>
    %80 = vector.broadcast %78 : vector<16x1xf32> to vector<16x128xf32>
    %81 = arith.mulf %80, %79 : vector<16x128xf32>
    %82 = arith.addf %77, %81 : vector<16x128xf32>
    %c0_26 = arith.constant 0 : index
    %c14 = arith.constant 14 : index
    %83 = vector.load %arg2[%c0_26, %c14] : memref<16x16xf32, #tpu.memory_space<vmem>>, vector<16x1xf32>
    %84 = vector.extract_strided_slice %13 {offsets = [0, 1], sizes = [16, 128], strides = [1, 1]} : vector<16x143xf32> to vector<16x128xf32>
    %85 = vector.broadcast %83 : vector<16x1xf32> to vector<16x128xf32>
    %86 = arith.mulf %85, %84 : vector<16x128xf32>
    %87 = arith.addf %82, %86 : vector<16x128xf32>
    %c0_27 = arith.constant 0 : index
    %c15 = arith.constant 15 : index
    %88 = vector.load %arg2[%c0_27, %c15] : memref<16x16xf32, #tpu.memory_space<vmem>>, vector<16x1xf32>
    %89 = vector.extract_strided_slice %13 {offsets = [0, 0], sizes = [16, 128], strides = [1, 1]} : vector<16x143xf32> to vector<16x128xf32>
    %90 = vector.broadcast %88 : vector<16x1xf32> to vector<16x128xf32>
    %91 = arith.mulf %90, %89 : vector<16x128xf32>
    %92 = arith.addf %87, %91 : vector<16x128xf32>
    %c0_28 = arith.constant 0 : index
    %c0_29 = arith.constant 0 : index
    %93 = vector.load %arg4[%c0_28, %c0_29] : memref<16x128xf32, #tpu.memory_space<vmem>>, vector<16x128xf32>
    tpu.vector_store %arg4[%c0_28, %c0_29], %92 {strides = array<i32>} : memref<16x128xf32, #tpu.memory_space<vmem>>, vector<16x128xf32>,
    return
  }
  func.func @transform_0(%arg0: i32) -> (i32, i32) {
    %c0_i32 = arith.constant 0 : i32
    %c0_i32_0 = arith.constant 0 : i32
    return %arg0, %c0_i32 : i32, i32
  }
  func.func @transform_1(%arg0: i32) -> (i32, i32) {
    %c0_i32 = arith.constant 0 : i32
    %c0_i32_0 = arith.constant 0 : i32
    return %arg0, %c0_i32 : i32, i32
  }
  func.func @transform_2(%arg0: i32) -> (i32, i32) {
    %c0_i32 = arith.constant 0 : i32
    %c0_i32_0 = arith.constant 0 : i32
    return %arg0, %c0_i32 : i32, i32
  }
  func.func @transform_3(%arg0: i32) -> (i32, i32) {
    %c0_i32 = arith.constant 0 : i32
    %c0_i32_0 = arith.constant 0 : i32
    return %arg0, %c0_i32 : i32, i32
  }
}

</mosaic_0001>

<llo_original>
// kernel: module_correction_forward.1
$region0: #{module_correction_forward.1}
  #allocation0 [shape = 'u32[]', space=smem, size = 0x4, offset = 0x4, fixed_abs, tag = 'smem constant byte address 0x4 - core index']
  #allocation1 [shape = 'u32[72,128]{1,0:T(1,128)}', space=vmem, size = 0x9000, scoped, tag = 'internal scratch']
  #allocation2 [shape = 'f32[16,271]{1,0:T(8,128)}', space=vmem, size = 0x6000, scoped, tag = 'scratch operand']
  %s0 = inlined_call_operand.vmem [shape: f32[32,64], index: 0, kind: input, shape index: {}]
  %s1 = inlined_call_operand.vmem [shape: f32[32,16], index: 1, kind: input, shape index: {}]
  %s2 = inlined_call_operand.vmem [shape: f32[32,1], index: 2, kind: input, shape index: {}]
  %s3 = inlined_call_operand.vmem [shape: f32[32,128], index: 3, kind: output, shape index: {}]
  %s4 = sld [smem:[#allocation0]]
  $region45: #{module_correction_forward.1} parent=0
    _
  %s6 = ssub.s32 1, %s4
  %s7 = scalar_select 0, %s6, %s4
  loop: start=0, step=1, limit=4
  $region2: #{module_correction_forward.1} parent=0 // loop_pre_header
    _
  $region3: #{module_correction_forward.1} parent=0 // loop_header
    %s9 = sphi 0, %s13
    %p10 = scmp.ge.s32.totalorder %s9, 4
    %s19 = sphi 0, %s21
    %s22 = sphi 0, %s19
    %s23 = sphi 0, %s22
    %s39 = sphi 0, %s23
    %s45 = sphi 0, %s47
    %s48 = sphi 0, %s45
    %s49 = sphi 0, %s48
    %s65 = sphi 0, %s49
    %s71 = sphi 0, %s73
    %s74 = sphi 0, %s71
    %s75 = sphi 0, %s74
    %s91 = sphi 0, %s75
    %s97 = sphi 0, %s99
    %s100 = sphi 0, %s97
    %s101 = sphi 0, %s100
    %s117 = sphi 0, %s101
  $region4: #{module_correction_forward.1} parent=0 // loop_header_branch
    %12 = sbr.rel (%p10) target = $region8
  $region5: #{module_correction_forward.1} parent=0 // loop_body
    %s14 = ssub.s32 %s9, 1
    %s15 = ssub.s32 %s9, 2
    %s16 = sadd.s32 %s9, 1
    %s17 = ssub.s32 %s9, %s16
    %p18 = scmp.eq.s32.totalorder %s17, 0
    %s20 = sadd.s32 %s19, 1
    %s21 = scalar_select %p18, %s19, %s20
    %p24 = pneg %p18
    %p25 = scmp.eq.s32.totalorder %s9, 1
    %p26 = por %p24, %p25
    %p27 = scmp.ne.s32.totalorder %s19, %s22
    %p28 = scmp.eq.s32.totalorder %s9, 0
    %p29 = por %p27, %p28
    %p30 = scmp.ne.s32.totalorder %s19, %s22
    %p31 = scmp.eq.s32.totalorder %s14, 1
    %p32 = por %p30, %p31
    %p33 = scmp.ne.s32.totalorder %s22, %s23
    %p34 = scmp.eq.s32.totalorder %s14, 0
    %p35 = por %p33, %p34
    %p36 = scmp.ne.s32.totalorder %s22, %s23
    %p37 = scmp.eq.s32.totalorder %s15, 1
    %p38 = por %p36, %p37
    %p40 = scmp.ne.s32.totalorder %s23, %s39
    %p41 = scmp.eq.s32.totalorder %s15, 0
    %p42 = por %p40, %p41
    %s43 = ssub.s32 %s9, %s16
    %p44 = scmp.eq.s32.totalorder %s43, 0
    %s46 = sadd.s32 %s45, 1
    %s47 = scalar_select %p44, %s45, %s46
    %p50 = pneg %p44
    %p51 = scmp.eq.s32.totalorder %s9, 1
    %p52 = por %p50, %p51
    %p53 = scmp.ne.s32.totalorder %s45, %s48
    %p54 = scmp.eq.s32.totalorder %s9, 0
    %p55 = por %p53, %p54
    %p56 = scmp.ne.s32.totalorder %s45, %s48
    %p57 = scmp.eq.s32.totalorder %s14, 1
    %p58 = por %p56, %p57
    %p59 = scmp.ne.s32.totalorder %s48, %s49
    %p60 = scmp.eq.s32.totalorder %s14, 0
    %p61 = por %p59, %p60
    %p62 = scmp.ne.s32.totalorder %s48, %s49
    %p63 = scmp.eq.s32.totalorder %s15, 1
    %p64 = por %p62, %p63
    %p66 = scmp.ne.s32.totalorder %s49, %s65
    %p67 = scmp.eq.s32.totalorder %s15, 0
    %p68 = por %p66, %p67
    %s69 = ssub.s32 %s9, %s16
    %p70 = scmp.eq.s32.totalorder %s69, 0
    %s72 = sadd.s32 %s71, 1
    %s73 = scalar_select %p70, %s71, %s72
    %p76 = pneg %p70
    %p77 = scmp.eq.s32.totalorder %s9, 1
    %p78 = por %p76, %p77
    %p79 = scmp.ne.s32.totalorder %s71, %s74
    %p80 = scmp.eq.s32.totalorder %s9, 0
    %p81 = por %p79, %p80
    %p82 = scmp.ne.s32.totalorder %s71, %s74
    %p83 = scmp.eq.s32.totalorder %s14, 1
    %p84 = por %p82, %p83
    %p85 = scmp.ne.s32.totalorder %s74, %s75
    %p86 = scmp.eq.s32.totalorder %s14, 0
    %p87 = por %p85, %p86
    %p88 = scmp.ne.s32.totalorder %s74, %s75
    %p89 = scmp.eq.s32.totalorder %s15, 1
    %p90 = por %p88, %p89
    %p92 = scmp.ne.s32.totalorder %s75, %s91
    %p93 = scmp.eq.s32.totalorder %s15, 0
    %p94 = por %p92, %p93
    %s95 = ssub.s32 %s9, %s16
    %p96 = scmp.eq.s32.totalorder %s95, 0
    %s98 = sadd.s32 %s97, 1
    %s99 = scalar_select %p96, %s97, %s98
    %p102 = pneg %p96
    %p103 = scmp.eq.s32.totalorder %s9, 1
    %p104 = por %p102, %p103
    %p105 = scmp.ne.s32.totalorder %s97, %s100
    %p106 = scmp.eq.s32.totalorder %s9, 0
    %p107 = por %p105, %p106
    %p108 = scmp.ne.s32.totalorder %s97, %s100
    %p109 = scmp.eq.s32.totalorder %s14, 1
    %p110 = por %p108, %p109
    %p111 = scmp.ne.s32.totalorder %s100, %s101
    %p112 = scmp.eq.s32.totalorder %s14, 0
    %p113 = por %p111, %p112
    %p114 = scmp.ne.s32.totalorder %s100, %s101
    %p115 = scmp.eq.s32.totalorder %s15, 1
    %p116 = por %p114, %p115
    %p118 = scmp.ne.s32.totalorder %s101, %s117
    %p119 = scmp.eq.s32.totalorder %s15, 0
    %p120 = por %p118, %p119
    %p121 = scmp.le.s32.totalorder 1, %s9
    %p122 = scmp.lt.s32.totalorder %s9, 3
    %p123 = pnand %p121, %p122
    %p124 = pneg %p123
    // Predicated region
    $region9: #{module_correction_forward.1} parent=5 // pred_check
      _
    $region10: #{module_correction_forward.1} parent=5 // pred_check_branch
      %126 = sbr.rel (%p123) target = $region12
    $region11: #{module_correction_forward.1} parent=5 // pred_region
      %s127 = ssub.s32 %s9, 1
    $region12: #{module_correction_forward.1} parent=5 // pred_fallthru
      _
    %p128 = scmp.lt.s32.totalorder %s9, 2
    // Predicated region
    $region13: #{module_correction_forward.1} parent=5 // pred_check
      %p129 = pneg %p128
    $region14: #{module_correction_forward.1} parent=5 // pred_check_branch
      %131 = sbr.rel (%p129) target = $region16
    $region15: #{module_correction_forward.1} parent=5 // pred_region
      // Predicated region
      $region17: #{module_correction_forward.1} parent=15 // pred_check
        %p132 = pneg %p29
      $region18: #{module_correction_forward.1} parent=15 // pred_check_branch
        %134 = sbr.rel (%p132) target = $region20
      $region19: #{module_correction_forward.1} parent=15 // pred_region
        %s135 = smul.u32 2, %s9
        %p136 = scmp.lt.s32.totalorder %s135, 3
        %s137 = scalar_select %p136, %s135, 3
        %s138 = smul.addr %s137, 8
        %s139 = scalar_lea.vmem %s0, %s138
        %s140 = smul.u32 2, %s9
      $region20: #{module_correction_forward.1} parent=15 // pred_fallthru
        _
      // Predicated region
      $region21: #{module_correction_forward.1} parent=15 // pred_check
        %p141 = pneg %p55
      $region22: #{module_correction_forward.1} parent=15 // pred_check_branch
        %143 = sbr.rel (%p141) target = $region24
      $region23: #{module_correction_forward.1} parent=15 // pred_region
        %s144 = smul.u32 2, %s9
        %p145 = scmp.lt.s32.totalorder %s144, 3
        %s146 = scalar_select %p145, %s144, 3
        %s147 = smul.addr %s146, 8
        %s148 = scalar_lea.vmem %s1, %s147
        %s149 = smul.u32 2, %s9
      $region24: #{module_correction_forward.1} parent=15 // pred_fallthru
        _
      // Predicated region
      $region25: #{module_correction_forward.1} parent=15 // pred_check
        %p150 = pneg %p81
      $region26: #{module_correction_forward.1} parent=15 // pred_check_branch
        %152 = sbr.rel (%p150) target = $region28
      $region27: #{module_correction_forward.1} parent=15 // pred_region
        %s153 = smul.u32 2, %s9
        %p154 = scmp.lt.s32.totalorder %s153, 3
        %s155 = scalar_select %p154, %s153, 3
        %s156 = smul.addr %s155, 8
        %s157 = scalar_lea.vmem %s2, %s156
        %s158 = smul.u32 2, %s9
      $region28: #{module_correction_forward.1} parent=15 // pred_fallthru
        _
    $region16: #{module_correction_forward.1} parent=5 // pred_fallthru
      _
    %p159 = scmp.le.s32.totalorder 1, %s9
    %p160 = scmp.lt.s32.totalorder %s9, 3
    %p161 = pnand %p159, %p160
    %p162 = pneg %p161
    // Predicated region
    $region29: #{module_correction_forward.1} parent=5 // pred_check
      _
    $region30: #{module_correction_forward.1} parent=5 // pred_check_branch
      %164 = sbr.rel (%p161) target = $region32
    $region31: #{module_correction_forward.1} parent=5 // pred_region
      %s165 = ssub.s32 %s9, 1
      %s166 = smul.u32 2, %s14
      %p167 = scmp.lt.s32.totalorder %s166, 3
      %s168 = scalar_select %p167, %s166, 3
      %s169 = smul.addr %s168, 8
      %s170 = scalar_lea.vmem %s0, %s169
      %p171 = pneg %p35
      %p172 = pneg %p32
      %s173 = smul.u32 2, %s14
      %p174 = scmp.lt.s32.totalorder %s173, 3
      %s175 = scalar_select %p174, %s173, 3
      %s176 = smul.addr %s175, 8
      %s177 = scalar_lea.vmem %s1, %s176
      %p178 = pneg %p61
      %p179 = pneg %p58
      %s180 = smul.u32 2, %s14
      %p181 = scmp.lt.s32.totalorder %s180, 3
      %s182 = scalar_select %p181, %s180, 3
      %s183 = smul.addr %s182, 8
      %s184 = scalar_lea.vmem %s2, %s183
      %p185 = pneg %p87
      %p186 = pneg %p84
      %p187 = pneg %p113
      %p188 = pneg %p110
      %s189 = smul.u32 2, %s14
      %p190 = scmp.lt.s32.totalorder %s189, 3
      %s191 = scalar_select %p190, %s189, 3
      %s192 = smul.addr %s191, 8
      %s193 = scalar_lea.vmem %s3, %s192
      %s194 = smul.u32 2, %s14
      %p195 = scmp.lt.s32.totalorder %s194, 3
      %s196 = scalar_select %p195, %s194, 3
      %s197 = smul.addr %s196, 8
      %s198 = scalar_lea.vmem %s0, %s197
      %s199 = smul.u32 2, %s14
      %s200 = smul.u32 2, %s14
      %p201 = scmp.lt.s32.totalorder %s200, 3
      %s202 = scalar_select %p201, %s200, 3
      %s203 = smul.addr %s202, 8
      %s204 = scalar_lea.vmem %s1, %s203
      %s205 = smul.u32 2, %s14
      %s206 = smul.u32 2, %s14
      %p207 = scmp.lt.s32.totalorder %s206, 3
      %s208 = scalar_select %p207, %s206, 3
      %s209 = smul.addr %s208, 8
      %s210 = scalar_lea.vmem %s2, %s209
      %s211 = smul.u32 2, %s14
      %s212 = smul.u32 2, %s14
      %p213 = scmp.lt.s32.totalorder %s212, 3
      %s214 = scalar_select %p213, %s212, 3
      %s215 = smul.addr %s214, 8
      %s216 = scalar_lea.vmem %s3, %s215
      %s217 = smul.u32 2, %s14
      %218 = vst [vmem:[#allocation2] sm:$0xff] 0.0
      %219 = vst [vmem:[#allocation2 + $0x18] sm:$0xff] 0.0
      %vm220 = vcmask 1048064
      %221 = vst.msk [vmem:[#allocation2 + $0x8] sm:$0xff] %vm220, 0.0
      %vm222 = vcmask 121856
      %223 = vst.msk [vmem:[#allocation2 + $0x10] sm:$0xff] %vm222, 0.0
      %224 = vst.msk [vmem:[#allocation2 + $0x20] sm:$0xff] %vm220, 0.0
      %225 = vst.msk [vmem:[#allocation2 + $0x28] sm:$0xff] %vm222, 0.0
      %v226 = vld [vmem:[%s198] sm:$0xff]
      %v227 = vld [vmem:[%s198 + $0x8] sm:$0xff]
      %vm228 = vcmask 523264
      %229 = vst.msk [vmem:[#allocation2 + $0x8] sm:$0xff] %vm228, %v226
      %230 = vst.msk [vmem:[#allocation2 + $0x20] sm:$0xff] %vm228, %v227
      %v231 = vld [vmem:[#allocation2] sm:$0xff]
      %v232 = vld [vmem:[#allocation2 + $0x8] sm:$0xff]
      %v233 = vld [vmem:[#allocation2 + $0x10] sm:$0xff]
      %v234 = vld [vmem:[#allocation2 + $0x18] sm:$0xff]
      %v235 = vld [vmem:[#allocation2 + $0x20] sm:$0xff]
      %v236 = vld [vmem:[#allocation2 + $0x28] sm:$0xff]
      %v237 = vld [vmem:[%s210] sm:$0xff]
      %v238 = vld [vmem:[%s210 + $0x8] sm:$0xff]
      %vm239 = vcmp.gt.f32.partialorder %v237, 0.0
      %vm240 = vcmp.gt.f32.partialorder %v238, 0.0
      %v241 = vsel %vm239, 1, 0
      %v242 = vsel %vm240, 1, 0
      %243 = vset.pattern.permute.xlu0 0
      %244 = vperm.xlu0 %243, %v241
      %v245 = vpop.permute.xlu0 %244
      %246 = vset.pattern.permute.xlu0 0
      %247 = vperm.xlu0 %246, %v242
      %v248 = vpop.permute.xlu0 %247
      %vm249 = vcmp.eq.s32.totalorder %v245, 1
      %vm250 = vcmp.eq.s32.totalorder %v248, 1
      %257 = vrot.lane.b32.xlu0 %v231, 121
      %v258 = vpop.permute.xlu0 %257
      %259 = vrot.lane.b32.xlu0 %v232, 121
      %v260 = vpop.permute.xlu0 %259
      %261 = vrot.lane.b32.xlu0 %v233, 121
      %v262 = vpop.permute.xlu0 %261
      %263 = vrot.lane.b32.xlu0 %v234, 121
      %v264 = vpop.permute.xlu0 %263
      %265 = vrot.lane.b32.xlu0 %v235, 121
      %v266 = vpop.permute.xlu0 %265
      %267 = vrot.lane.b32.xlu0 %v236, 121
      %v268 = vpop.permute.xlu0 %267
      %vm269 = vcmask 990208
      %v270 = vsel %vm269, %v258, %v260
      %v271 = vsel %vm269, %v260, %v262
      %v272 = vsel %vm269, %v264, %v266
      %v273 = vsel %vm269, %v266, %v268
      %v280 = vsel %vm249, %v231, %v270
      %v281 = vsel %vm249, %v232, %v271
      %v282 = vsel %vm249, %v233, %v262
      %v283 = vsel %vm250, %v234, %v272
      %v284 = vsel %vm250, %v235, %v273
      %v285 = vsel %vm250, %v236, %v268
      %v286 = vld [vmem:[%s204] sm:$0xff]
      %v287 = vld [vmem:[%s204 + $0x8] sm:$0xff]
      %289 = vset.pattern.permute.xlu0 0
      %290 = vperm.xlu0 %289, %v286
      %v291 = vpop.permute.xlu0 %290
      %294 = vset.pattern.permute.xlu0 0
      %295 = vperm.xlu0 %294, %v287
      %v296 = vpop.permute.xlu0 %295
      %v298 = vmul.f32 %v291, %v281
      %v299 = vmul.f32 %v291, %v282
      %v300 = vmul.f32 %v296, %v284
      %v301 = vmul.f32 %v296, %v285
      %302 = vset.pattern.permute.xlu0 1
      %303 = vperm.xlu0 %302, %v286
      %v304 = vpop.permute.xlu0 %303
      %306 = vset.pattern.permute.xlu0 1
      %307 = vperm.xlu0 %306, %v287
      %v308 = vpop.permute.xlu0 %307
      %v310 = vmul.f32 %v304, %v281
      %v311 = vmul.f32 %v304, %v282
      %v312 = vmul.f32 %v308, %v284
      %v313 = vmul.f32 %v308, %v285
      %318 = vrot.lane.b32.xlu0 %v310, 1
      %v319 = vpop.permute.xlu0 %318
      %320 = vrot.lane.b32.xlu0 %v311, 1
      %v321 = vpop.permute.xlu0 %320
      %322 = vrot.lane.b32.xlu0 %v312, 1
      %v323 = vpop.permute.xlu0 %322
      %324 = vrot.lane.b32.xlu0 %v313, 1
      %v325 = vpop.permute.xlu0 %324
      %vm326 = vcmask 7168
      %v327 = vsel %vm326, %v319, %v321
      %v328 = vsel %vm326, %v323, %v325
      %v333 = vadd.f32 %v298, %v319
      %v334 = vadd.f32 %v299, %v327
      %v335 = vadd.f32 %v300, %v323
      %v336 = vadd.f32 %v301, %v328
      %337 = vset.pattern.permute.xlu0 2
      %338 = vperm.xlu0 %337, %v286
      %v339 = vpop.permute.xlu0 %338
      %341 = vset.pattern.permute.xlu0 2
      %342 = vperm.xlu0 %341, %v287
      %v343 = vpop.permute.xlu0 %342
      %v345 = vmul.f32 %v339, %v281
      %v346 = vmul.f32 %v339, %v282
      %v347 = vmul.f32 %v343, %v284
      %v348 = vmul.f32 %v343, %v285
      %353 = vrot.lane.b32.xlu0 %v345, 2
      %v354 = vpop.permute.xlu0 %353
      %355 = vrot.lane.b32.xlu0 %v346, 2
      %v356 = vpop.permute.xlu0 %355
      %357 = vrot.lane.b32.xlu0 %v347, 2
      %v358 = vpop.permute.xlu0 %357
      %359 = vrot.lane.b32.xlu0 %v348, 2
      %v360 = vpop.permute.xlu0 %359
      %vm361 = vcmask 15360
      %v362 = vsel %vm361, %v354, %v356
      %v363 = vsel %vm361, %v358, %v360
      %v368 = vadd.f32 %v333, %v354
      %v369 = vadd.f32 %v334, %v362
      %v370 = vadd.f32 %v335, %v358
      %v371 = vadd.f32 %v336, %v363
      %372 = vset.pattern.permute.xlu0 3
      %373 = vperm.xlu0 %372, %v286
      %v374 = vpop.permute.xlu0 %373
      %376 = vset.pattern.permute.xlu0 3
      %377 = vperm.xlu0 %376, %v287
      %v378 = vpop.permute.xlu0 %377
      %v380 = vmul.f32 %v374, %v281
      %v381 = vmul.f32 %v374, %v282
      %v382 = vmul.f32 %v378, %v284
      %v383 = vmul.f32 %v378, %v285
      %388 = vrot.lane.b32.xlu0 %v380, 3
      %v389 = vpop.permute.xlu0 %388
      %390 = vrot.lane.b32.xlu0 %v381, 3
      %v391 = vpop.permute.xlu0 %390
      %392 = vrot.lane.b32.xlu0 %v382, 3
      %v393 = vpop.permute.xlu0 %392
      %394 = vrot.lane.b32.xlu0 %v383, 3
      %v395 = vpop.permute.xlu0 %394
      %vm396 = vcmask 23552
      %v397 = vsel %vm396, %v389, %v391
      %v398 = vsel %vm396, %v393, %v395
      %v403 = vadd.f32 %v368, %v389
      %v404 = vadd.f32 %v369, %v397
      %v405 = vadd.f32 %v370, %v393
      %v406 = vadd.f32 %v371, %v398
      %407 = vset.pattern.permute.xlu0 4
      %408 = vperm.xlu0 %407, %v286
      %v409 = vpop.permute.xlu0 %408
      %411 = vset.pattern.permute.xlu0 4
      %412 = vperm.xlu0 %411, %v287
      %v413 = vpop.permute.xlu0 %412
      %v415 = vmul.f32 %v409, %v281
      %v416 = vmul.f32 %v413, %v284
      %419 = vrot.lane.b32.xlu0 %v415, 4
      %v420 = vpop.permute.xlu0 %419
      %421 = vrot.lane.b32.xlu0 %v416, 4
      %v422 = vpop.permute.xlu0 %421
      %v425 = vadd.f32 %v403, %v420
      %v426 = vadd.f32 %v404, %v420
      %v427 = vadd.f32 %v405, %v422
      %v428 = vadd.f32 %v406, %v422
      %429 = vset.pattern.permute.xlu0 5
      %430 = vperm.xlu0 %429, %v286
      %v431 = vpop.permute.xlu0 %430
      %433 = vset.pattern.permute.xlu0 5
      %434 = vperm.xlu0 %433, %v287
      %v435 = vpop.permute.xlu0 %434
      %v437 = vmul.f32 %v431, %v280
      %v438 = vmul.f32 %v431, %v281
      %v439 = vmul.f32 %v435, %v283
      %v440 = vmul.f32 %v435, %v284
      %445 = vrot.lane.b32.xlu0 %v437, 5
      %v446 = vpop.permute.xlu0 %445
      %447 = vrot.lane.b32.xlu0 %v438, 5
      %v448 = vpop.permute.xlu0 %447
      %449 = vrot.lane.b32.xlu0 %v439, 5
      %v450 = vpop.permute.xlu0 %449
      %451 = vrot.lane.b32.xlu0 %v440, 5
      %v452 = vpop.permute.xlu0 %451
      %vm453 = vcmask 39936
      %v454 = vsel %vm453, %v446, %v448
      %v455 = vsel %vm453, %v450, %v452
      %v460 = vadd.f32 %v425, %v454
      %v461 = vadd.f32 %v426, %v448
      %v462 = vadd.f32 %v427, %v455
      %v463 = vadd.f32 %v428, %v452
      %464 = vset.pattern.permute.xlu0 6
      %465 = vperm.xlu0 %464, %v286
      %v466 = vpop.permute.xlu0 %465
      %468 = vset.pattern.permute.xlu0 6
      %469 = vperm.xlu0 %468, %v287
      %v470 = vpop.permute.xlu0 %469
      %v472 = vmul.f32 %v466, %v280
      %v473 = vmul.f32 %v466, %v281
      %v474 = vmul.f32 %v470, %v283
      %v475 = vmul.f32 %v470, %v284
      %480 = vrot.lane.b32.xlu0 %v472, 6
      %v481 = vpop.permute.xlu0 %480
      %482 = vrot.lane.b32.xlu0 %v473, 6
      %v483 = vpop.permute.xlu0 %482
      %484 = vrot.lane.b32.xlu0 %v474, 6
      %v485 = vpop.permute.xlu0 %484
      %486 = vrot.lane.b32.xlu0 %v475, 6
      %v487 = vpop.permute.xlu0 %486
      %vm488 = vcmask 48128
      %v489 = vsel %vm488, %v481, %v483
      %v490 = vsel %vm488, %v485, %v487
      %v495 = vadd.f32 %v460, %v489
      %v496 = vadd.f32 %v461, %v483
      %v497 = vadd.f32 %v462, %v490
      %v498 = vadd.f32 %v463, %v487
      %499 = vset.pattern.permute.xlu0 7
      %500 = vperm.xlu0 %499, %v286
      %v501 = vpop.permute.xlu0 %500
      %503 = vset.pattern.permute.xlu0 7
      %504 = vperm.xlu0 %503, %v287
      %v505 = vpop.permute.xlu0 %504
      %v507 = vmul.f32 %v501, %v280
      %v508 = vmul.f32 %v501, %v281
      %v509 = vmul.f32 %v505, %v283
      %v510 = vmul.f32 %v505, %v284
      %515 = vrot.lane.b32.xlu0 %v507, 7
      %v516 = vpop.permute.xlu0 %515
      %517 = vrot.lane.b32.xlu0 %v508, 7
      %v518 = vpop.permute.xlu0 %517
      %519 = vrot.lane.b32.xlu0 %v509, 7
      %v520 = vpop.permute.xlu0 %519
      %521 = vrot.lane.b32.xlu0 %v510, 7
      %v522 = vpop.permute.xlu0 %521
      %vm523 = vcmask 56320
      %v524 = vsel %vm523, %v516, %v518
      %v525 = vsel %vm523, %v520, %v522
      %v530 = vadd.f32 %v495, %v524
      %v531 = vadd.f32 %v496, %v518
      %v532 = vadd.f32 %v497, %v525
      %v533 = vadd.f32 %v498, %v522
      %534 = vset.pattern.permute.xlu0 8
      %535 = vperm.xlu0 %534, %v286
      %v536 = vpop.permute.xlu0 %535
      %538 = vset.pattern.permute.xlu0 8
      %539 = vperm.xlu0 %538, %v287
      %v540 = vpop.permute.xlu0 %539
      %v542 = vmul.f32 %v536, %v280
      %v543 = vmul.f32 %v536, %v281
      %v544 = vmul.f32 %v540, %v283
      %v545 = vmul.f32 %v540, %v284
      %550 = vrot.lane.b32.xlu0 %v542, 8
      %v551 = vpop.permute.xlu0 %550
      %552 = vrot.lane.b32.xlu0 %v543, 8
      %v553 = vpop.permute.xlu0 %552
      %554 = vrot.lane.b32.xlu0 %v544, 8
      %v555 = vpop.permute.xlu0 %554
      %556 = vrot.lane.b32.xlu0 %v545, 8
      %v557 = vpop.permute.xlu0 %556
      %vm558 = vcmask 64512
      %v559 = vsel %vm558, %v551, %v553
      %v560 = vsel %vm558, %v555, %v557
      %v565 = vadd.f32 %v530, %v559
      %v566 = vadd.f32 %v531, %v553
      %v567 = vadd.f32 %v532, %v560
      %v568 = vadd.f32 %v533, %v557
      %569 = vset.pattern.permute.xlu0 9
      %570 = vperm.xlu0 %569, %v286
      %v571 = vpop.permute.xlu0 %570
      %573 = vset.pattern.permute.xlu0 9
      %574 = vperm.xlu0 %573, %v287
      %v575 = vpop.permute.xlu0 %574
      %v577 = vmul.f32 %v571, %v280
      %v578 = vmul.f32 %v571, %v281
      %v579 = vmul.f32 %v575, %v283
      %v580 = vmul.f32 %v575, %v284
      %585 = vrot.lane.b32.xlu0 %v577, 9
      %v586 = vpop.permute.xlu0 %585
      %587 = vrot.lane.b32.xlu0 %v578, 9
      %v588 = vpop.permute.xlu0 %587
      %589 = vrot.lane.b32.xlu0 %v579, 9
      %v590 = vpop.permute.xlu0 %589
      %591 = vrot.lane.b32.xlu0 %v580, 9
      %v592 = vpop.permute.xlu0 %591
      %vm593 = vcmask 72704
      %v594 = vsel %vm593, %v586, %v588
      %v595 = vsel %vm593, %v590, %v592
      %v600 = vadd.f32 %v565, %v594
      %v601 = vadd.f32 %v566, %v588
      %v602 = vadd.f32 %v567, %v595
      %v603 = vadd.f32 %v568, %v592
      %604 = vset.pattern.permute.xlu0 10
      %605 = vperm.xlu0 %604, %v286
      %v606 = vpop.permute.xlu0 %605
      %608 = vset.pattern.permute.xlu0 10
      %609 = vperm.xlu0 %608, %v287
      %v610 = vpop.permute.xlu0 %609
      %v612 = vmul.f32 %v606, %v280
      %v613 = vmul.f32 %v606, %v281
      %v614 = vmul.f32 %v610, %v283
      %v615 = vmul.f32 %v610, %v284
      %620 = vrot.lane.b32.xlu0 %v612, 10
      %v621 = vpop.permute.xlu0 %620
      %622 = vrot.lane.b32.xlu0 %v613, 10
      %v623 = vpop.permute.xlu0 %622
      %624 = vrot.lane.b32.xlu0 %v614, 10
      %v625 = vpop.permute.xlu0 %624
      %626 = vrot.lane.b32.xlu0 %v615, 10
      %v627 = vpop.permute.xlu0 %626
      %vm628 = vcmask 80896
      %v629 = vsel %vm628, %v621, %v623
      %v630 = vsel %vm628, %v625, %v627
      %v635 = vadd.f32 %v600, %v629
      %v636 = vadd.f32 %v601, %v623
      %v637 = vadd.f32 %v602, %v630
      %v638 = vadd.f32 %v603, %v627
      %639 = vset.pattern.permute.xlu0 11
      %640 = vperm.xlu0 %639, %v286
      %v641 = vpop.permute.xlu0 %640
      %643 = vset.pattern.permute.xlu0 11
      %644 = vperm.xlu0 %643, %v287
      %v645 = vpop.permute.xlu0 %644
      %v647 = vmul.f32 %v641, %v280
      %v648 = vmul.f32 %v641, %v281
      %v649 = vmul.f32 %v645, %v283
      %v650 = vmul.f32 %v645, %v284
      %655 = vrot.lane.b32.xlu0 %v647, 11
      %v656 = vpop.permute.xlu0 %655
      %657 = vrot.lane.b32.xlu0 %v648, 11
      %v658 = vpop.permute.xlu0 %657
      %659 = vrot.lane.b32.xlu0 %v649, 11
      %v660 = vpop.permute.xlu0 %659
      %661 = vrot.lane.b32.xlu0 %v650, 11
      %v662 = vpop.permute.xlu0 %661
      %vm663 = vcmask 89088
      %v664 = vsel %vm663, %v656, %v658
      %v665 = vsel %vm663, %v660, %v662
      %v670 = vadd.f32 %v635, %v664
      %v671 = vadd.f32 %v636, %v658
      %v672 = vadd.f32 %v637, %v665
      %v673 = vadd.f32 %v638, %v662
      %674 = vset.pattern.permute.xlu0 12
      %675 = vperm.xlu0 %674, %v286
      %v676 = vpop.permute.xlu0 %675
      %678 = vset.pattern.permute.xlu0 12
      %679 = vperm.xlu0 %678, %v287
      %v680 = vpop.permute.xlu0 %679
      %v682 = vmul.f32 %v676, %v280
      %v683 = vmul.f32 %v676, %v281
      %v684 = vmul.f32 %v680, %v283
      %v685 = vmul.f32 %v680, %v284
      %690 = vrot.lane.b32.xlu0 %v682, 12
      %v691 = vpop.permute.xlu0 %690
      %692 = vrot.lane.b32.xlu0 %v683, 12
      %v693 = vpop.permute.xlu0 %692
      %694 = vrot.lane.b32.xlu0 %v684, 12
      %v695 = vpop.permute.xlu0 %694
      %696 = vrot.lane.b32.xlu0 %v685, 12
      %v697 = vpop.permute.xlu0 %696
      %vm698 = vcmask 97280
      %v699 = vsel %vm698, %v691, %v693
      %v700 = vsel %vm698, %v695, %v697
      %v705 = vadd.f32 %v670, %v699
      %v706 = vadd.f32 %v671, %v693
      %v707 = vadd.f32 %v672, %v700
      %v708 = vadd.f32 %v673, %v697
      %709 = vset.pattern.permute.xlu0 13
      %710 = vperm.xlu0 %709, %v286
      %v711 = vpop.permute.xlu0 %710
      %713 = vset.pattern.permute.xlu0 13
      %714 = vperm.xlu0 %713, %v287
      %v715 = vpop.permute.xlu0 %714
      %v717 = vmul.f32 %v711, %v280
      %v718 = vmul.f32 %v711, %v281
      %v719 = vmul.f32 %v715, %v283
      %v720 = vmul.f32 %v715, %v284
      %725 = vrot.lane.b32.xlu0 %v717, 13
      %v726 = vpop.permute.xlu0 %725
      %727 = vrot.lane.b32.xlu0 %v718, 13
      %v728 = vpop.permute.xlu0 %727
      %729 = vrot.lane.b32.xlu0 %v719, 13
      %v730 = vpop.permute.xlu0 %729
      %731 = vrot.lane.b32.xlu0 %v720, 13
      %v732 = vpop.permute.xlu0 %731
      %vm733 = vcmask 105472
      %v734 = vsel %vm733, %v726, %v728
      %v735 = vsel %vm733, %v730, %v732
      %v740 = vadd.f32 %v705, %v734
      %v741 = vadd.f32 %v706, %v728
      %v742 = vadd.f32 %v707, %v735
      %v743 = vadd.f32 %v708, %v732
      %744 = vset.pattern.permute.xlu0 14
      %745 = vperm.xlu0 %744, %v286
      %v746 = vpop.permute.xlu0 %745
      %748 = vset.pattern.permute.xlu0 14
      %749 = vperm.xlu0 %748, %v287
      %v750 = vpop.permute.xlu0 %749
      %v752 = vmul.f32 %v746, %v280
      %v753 = vmul.f32 %v746, %v281
      %v754 = vmul.f32 %v750, %v283
      %v755 = vmul.f32 %v750, %v284
      %760 = vrot.lane.b32.xlu0 %v752, 14
      %v761 = vpop.permute.xlu0 %760
      %762 = vrot.lane.b32.xlu0 %v753, 14
      %v763 = vpop.permute.xlu0 %762
      %764 = vrot.lane.b32.xlu0 %v754, 14
      %v765 = vpop.permute.xlu0 %764
      %766 = vrot.lane.b32.xlu0 %v755, 14
      %v767 = vpop.permute.xlu0 %766
      %vm768 = vcmask 113664
      %v769 = vsel %vm768, %v761, %v763
      %v770 = vsel %vm768, %v765, %v767
      %v775 = vadd.f32 %v740, %v769
      %v776 = vadd.f32 %v741, %v763
      %v777 = vadd.f32 %v742, %v770
      %v778 = vadd.f32 %v743, %v767
      %779 = vset.pattern.permute.xlu0 15
      %780 = vperm.xlu0 %779, %v286
      %v781 = vpop.permute.xlu0 %780
      %783 = vset.pattern.permute.xlu0 15
      %784 = vperm.xlu0 %783, %v287
      %v785 = vpop.permute.xlu0 %784
      %v787 = vmul.f32 %v781, %v280
      %v788 = vmul.f32 %v781, %v281
      %v789 = vmul.f32 %v785, %v283
      %v790 = vmul.f32 %v785, %v284
      %795 = vrot.lane.b32.xlu0 %v787, 15
      %v796 = vpop.permute.xlu0 %795
      %797 = vrot.lane.b32.xlu0 %v788, 15
      %v798 = vpop.permute.xlu0 %797
      %799 = vrot.lane.b32.xlu0 %v789, 15
      %v800 = vpop.permute.xlu0 %799
      %801 = vrot.lane.b32.xlu0 %v790, 15
      %v802 = vpop.permute.xlu0 %801
      %v803 = vsel %vm222, %v796, %v798
      %v804 = vsel %vm222, %v800, %v802
      %v809 = vadd.f32 %v775, %v803
      %v810 = vadd.f32 %v776, %v798
      %v811 = vadd.f32 %v777, %v804
      %v812 = vadd.f32 %v778, %v802
      %817 = vrot.lane.b32.xlu0 %v809, 124
      %v818 = vpop.permute.xlu0 %817
      %819 = vrot.lane.b32.xlu0 %v810, 124
      %v820 = vpop.permute.xlu0 %819
      %821 = vrot.lane.b32.xlu0 %v811, 124
      %v822 = vpop.permute.xlu0 %821
      %823 = vrot.lane.b32.xlu0 %v812, 124
      %v824 = vpop.permute.xlu0 %823
      %vm825 = vcmask 1014784
      %v826 = vsel %vm825, %v818, %v820
      %v827 = vsel %vm825, %v822, %v824
      %830 = vst [vmem:[%s216] sm:$0xff] %v826
      %831 = vst [vmem:[%s216 + $0x8] sm:$0xff] %v827
      %s832 = smul.u32 2, %s14
      %p833 = scmp.lt.s32.totalorder %s832, 3
      %s834 = scalar_select %p833, %s832, 3
      %s835 = smul.addr %s834, 8
      %s836 = scalar_lea.vmem %s3, %s835
      // Predicated region
      $region33: #{module_correction_forward.1} parent=31 // pred_check
        %p837 = pneg %p110
      $region34: #{module_correction_forward.1} parent=31 // pred_check_branch
        %839 = sbr.rel (%p837) target = $region36
      $region35: #{module_correction_forward.1} parent=31 // pred_region
        %s840 = smul.u32 2, %s14
      $region36: #{module_correction_forward.1} parent=31 // pred_fallthru
        _
    $region32: #{module_correction_forward.1} parent=5 // pred_fallthru
      _
    %p841 = scmp.le.s32.totalorder 2, %s9
    // Predicated region
    $region37: #{module_correction_forward.1} parent=5 // pred_check
      %p842 = pneg %p841
    $region38: #{module_correction_forward.1} parent=5 // pred_check_branch
      %844 = sbr.rel (%p842) target = $region40
    $region39: #{module_correction_forward.1} parent=5 // pred_region
      %s845 = ssub.s32 %s9, 2
      // Predicated region
      $region41: #{module_correction_forward.1} parent=39 // pred_check
        %p846 = pneg %p116
      $region42: #{module_correction_forward.1} parent=39 // pred_check_branch
        %848 = sbr.rel (%p846) target = $region44
      $region43: #{module_correction_forward.1} parent=39 // pred_region
        %s849 = smul.u32 2, %s15
        %p850 = scmp.lt.s32.totalorder %s849, 3
        %s851 = scalar_select %p850, %s849, 3
        %s852 = smul.addr %s851, 8
        %s853 = scalar_lea.vmem %s3, %s852
      $region44: #{module_correction_forward.1} parent=39 // pred_fallthru
        _
    $region40: #{module_correction_forward.1} parent=5 // pred_fallthru
      _
  $region6: #{module_correction_forward.1} parent=0 // loop_footer
    %s13 = sadd.s32 1, %s9
  $region7: #{module_correction_forward.1} parent=0 // loop_footer_branch
    %8 = sbr.rel target = $region3
  $region8: #{module_correction_forward.1} parent=0 // loop_exit
    _

</llo_original>
